<compile_context>
chip_gen: v6e
topology: v6e:2x2x1
jax: 0.10.0
libtpu: 0.0.40
codegen_flags: <defaults>
</compile_context>

<pallas_src>
import functools

import jax
import jax.numpy as jnp
from jax.experimental import pallas as pl
from jax.experimental.pallas import tpu as pltpu


def _round_up(x: int, m: int) -> int:
    return ((x + m - 1) // m) * m


def _prompt_assemble_kernel(ctx_ref, prefix_ref, suffix_ref, out_ref, *,
                            n_ctx: int, ctx_dim: int):
    # Lane-flattened layout (embedding dim folded into the lane axis):
    #   ctx_ref:    (1, n_ctx*ctx_dim)            -- shared across all classes
    #   prefix_ref: (TC, ctx_dim)                 -- per-class SOS embedding
    #   suffix_ref: (TC, n_suf*ctx_dim)           -- per-class name+EOS+pad embeddings
    #   out_ref:    (TC, (1+n_ctx+n_suf)*ctx_dim)
    # All lane offsets below are multiples of ctx_dim (a multiple of 128), so
    # every store is an unmasked, lane-aligned full-vreg store.
    tc = out_ref.shape[0]
    out_dtype = out_ref.dtype

    # One sublane broadcast of the shared ctx block per class tile.
    ctx_row = ctx_ref[...].astype(out_dtype)                    # (1, n_ctx*ctx_dim)
    ctx_tile = jnp.broadcast_to(ctx_row, (tc, n_ctx * ctx_dim))  # (TC, n_ctx*ctx_dim)

    out_ref[:, 0:ctx_dim] = prefix_ref[...].astype(out_dtype)
    out_ref[:, ctx_dim:(1 + n_ctx) * ctx_dim] = ctx_tile
    out_ref[:, (1 + n_ctx) * ctx_dim:] = suffix_ref[...].astype(out_dtype)


def prompt_learner_forward(ctx, token_prefix, token_suffix, *, class_tile=None):
    """JAX/Pallas equivalent of PromptLearner.forward (class_token_position='end').

    ctx:          (n_ctx, ctx_dim)
    token_prefix: (n_cls, 1, ctx_dim)
    token_suffix: (n_cls, n_suf, ctx_dim)
    returns       (n_cls, 1 + n_ctx + n_suf, ctx_dim)
    """
    n_ctx, ctx_dim = ctx.shape
    n_cls = token_prefix.shape[0]
    n_suf = token_suffix.shape[1]
    seq_len = 1 + n_ctx + n_suf
    assert ctx_dim % 128 == 0, "ctx_dim must be a multiple of 128 (CLIP dims are)"

    # Explicit output dtype (torch.cat requires a common dtype; make the cast direction explicit).
    out_dtype = jnp.result_type(ctx.dtype, token_prefix.dtype, token_suffix.dtype)
    itemsize = jnp.dtype(out_dtype).itemsize

    # --- choose the class tile (TC), multiple of 8 ------------------------------------
    if class_tile is None:
        # per-class bytes resident per buffer: output row + prefix row + suffix row.
        bytes_per_class = (seq_len + 1 + n_suf) * ctx_dim * itemsize
        budget = 8 * 1024 * 1024  # per-buffer budget; x2 double-buffering ~= 16 MiB << 32 MiB scoped
        class_tile = max(8, (budget // bytes_per_class) // 8 * 8)
        # Don't tile past the (padded) number of classes.
        class_tile = min(class_tile, _round_up(n_cls, 8))
        # Keep >= 2 grid steps when there is enough work so v7x's 2 TensorCores
        # both get a share of the parallel class axis.
        if n_cls > 16:
            class_tile = min(class_tile, _round_up(pl.cdiv(n_cls, 2), 8))
    tc = _round_up(max(8, class_tile), 8)

    n_cls_pad = _round_up(n_cls, tc)
    n_blocks = n_cls_pad // tc

    # --- lane-flatten inputs (free row-major views) and pad the class axis -------------
    ctx_flat = ctx.reshape(1, n_ctx * ctx_dim)
    prefix_flat = token_prefix.reshape(n_cls, ctx_dim)
    suffix_flat = token_suffix.reshape(n_cls, n_suf * ctx_dim)
    if n_cls_pad != n_cls:
        pad = n_cls_pad - n_cls
        prefix_flat = jnp.pad(prefix_flat, ((0, pad), (0, 0)))
        suffix_flat = jnp.pad(suffix_flat, ((0, pad), (0, 0)))

    grid_spec = pltpu.PrefetchScalarGridSpec(
        num_scalar_prefetch=0,
        grid=(n_blocks,),
        in_specs=[
            # shared ctx: constant block index -> fetched once
            pl.BlockSpec((1, n_ctx * ctx_dim), lambda i: (0, 0)),
            # per-class-tile prefix / suffix slabs
            pl.BlockSpec((tc, ctx_dim), lambda i: (i, 0)),
            pl.BlockSpec((tc, n_suf * ctx_dim), lambda i: (i, 0)),
        ],
        out_specs=pl.BlockSpec((tc, seq_len * ctx_dim), lambda i: (i, 0)),
    )

    bytes_read = (ctx.size * jnp.dtype(ctx.dtype).itemsize
                  + token_prefix.size * jnp.dtype(token_prefix.dtype).itemsize
                  + token_suffix.size * jnp.dtype(token_suffix.dtype).itemsize)
    bytes_written = n_cls_pad * seq_len * ctx_dim * itemsize

    out_flat = pl.pallas_call(
        functools.partial(_prompt_assemble_kernel, n_ctx=n_ctx, ctx_dim=ctx_dim),
        out_shape=jax.ShapeDtypeStruct((n_cls_pad, seq_len * ctx_dim), out_dtype),
        grid_spec=grid_spec,
        compiler_params=pltpu.CompilerParams(
            dimension_semantics=("parallel",)),
        cost_estimate=pl.CostEstimate(
            flops=0, transcendentals=0,
            bytes_accessed=int(bytes_read + bytes_written)),
    )(ctx_flat, prefix_flat, suffix_flat)

    # Drop class padding and restore the (n_cls, seq_len, ctx_dim) view (free reshape).
    return out_flat[:n_cls].reshape(n_cls, seq_len, ctx_dim)


if __name__ == "__main__":
    # Small, CLIP-consistent shapes: n_cls classes, n_ctx learned context tokens,
    # ctx_dim embedding width (multiple of 128), n_suf suffix tokens
    # (classname tokens + EOS + padding).  n_cls=2 also exercises the
    # class-axis padding path (not a multiple of 8).
    n_cls, n_ctx, ctx_dim, n_suf = 2, 16, 128, 8

    key = jax.random.PRNGKey(0)
    k_ctx, k_pre, k_suf = jax.random.split(key, 3)

    # nn.init.normal_(ctx_vectors, std=0.02)
    ctx = 0.02 * jax.random.normal(k_ctx, (n_ctx, ctx_dim), dtype=jnp.float32)
    # token_prefix / token_suffix stand in for frozen CLIP token embeddings
    # (deterministic synthetic values; no checkpoint load).
    token_prefix = jax.random.normal(k_pre, (n_cls, 1, ctx_dim), dtype=jnp.float32)
    token_suffix = jax.random.normal(k_suf, (n_cls, n_suf, ctx_dim), dtype=jnp.float32)

    prompts = prompt_learner_forward(ctx, token_prefix, token_suffix)
    prompts = jax.block_until_ready(prompts)

    # Pure-JAX reference: ctx.unsqueeze(0).expand(n_cls,...) + concat along seq.
    ctx_b = jnp.broadcast_to(ctx[None, :, :], (n_cls, n_ctx, ctx_dim))
    ref = jnp.concatenate([token_prefix, ctx_b, token_suffix], axis=1)

    assert prompts.shape == (n_cls, 1 + n_ctx + n_suf, ctx_dim), prompts.shape
    assert prompts.dtype == ref.dtype
    assert jnp.allclose(prompts, ref), "Pallas output mismatch vs reference"

    # TODO(synk): the 'middle'/'front' class_token_position branches are not
    # ported (the module hard-codes class_token_position='end' in __init__).

    print("KERNEL_OK")
</pallas_src>

<mosaic_0001>
module attributes {stable_mosaic.version = 11 : i64} {
  func.func @_prompt_assemble_kernel(%arg0: i32, %arg1: memref<1x2048xf32, #tpu.memory_space<vmem>>, %arg2: memref<8x128xf32, #tpu.memory_space<vmem>>, %arg3: memref<8x1024xf32, #tpu.memory_space<vmem>>, %arg4: memref<8x3200xf32, #tpu.memory_space<vmem>>) attributes {dimension_semantics = [#tpu.dimension_semantics<parallel>], iteration_bounds = array<i64: 1>, scalar_prefetch = 0 : i64, scratch_operands = 0 : i64, tpu.core_type = #tpu.core_type<tc>, window_params = [{pipeline_mode = #tpu.pipeline_mode<synchronous>, transform_indices = @transform_0, window_bounds = array<i64: 1, 2048>}, {transform_indices = @transform_1, window_bounds = array<i64: 8, 128>}, {transform_indices = @transform_2, window_bounds = array<i64: 8, 1024>}, {transform_indices = @transform_3, window_bounds = array<i64: 8, 3200>}]} {
    %c0 = arith.constant 0 : index
    %c0_0 = arith.constant 0 : index
    %0 = vector.load %arg1[%c0, %c0_0] : memref<1x2048xf32, #tpu.memory_space<vmem>>, vector<1x2048xf32>
    %1 = vector.shape_cast %0 : vector<1x2048xf32> to vector<1x2048xf32>
    %2 = vector.broadcast %1 : vector<1x2048xf32> to vector<8x2048xf32>
    %c0_1 = arith.constant 0 : index
    %c0_2 = arith.constant 0 : index
    %3 = vector.load %arg2[%c0_1, %c0_2] : memref<8x128xf32, #tpu.memory_space<vmem>>, vector<8x128xf32>
    %c0_3 = arith.constant 0 : index
    %c0_4 = arith.constant 0 : index
    %4 = vector.load %arg4[%c0_3, %c0_4] : memref<8x3200xf32, #tpu.memory_space<vmem>>, vector<8x128xf32>
    tpu.vector_store %arg4[%c0_3, %c0_4], %3 {strides = array<i32>} : memref<8x3200xf32, #tpu.memory_space<vmem>>, vector<8x128xf32>,
    %c0_5 = arith.constant 0 : index
    %c128 = arith.constant 128 : index
    %5 = vector.load %arg4[%c0_5, %c128] : memref<8x3200xf32, #tpu.memory_space<vmem>>, vector<8x2048xf32>
    tpu.vector_store %arg4[%c0_5, %c128], %2 {strides = array<i32>} : memref<8x3200xf32, #tpu.memory_space<vmem>>, vector<8x2048xf32>,
    %c0_6 = arith.constant 0 : index
    %c0_7 = arith.constant 0 : index
    %6 = vector.load %arg3[%c0_6, %c0_7] : memref<8x1024xf32, #tpu.memory_space<vmem>>, vector<8x1024xf32>
    %c0_8 = arith.constant 0 : index
    %c2176 = arith.constant 2176 : index
    %7 = vector.load %arg4[%c0_8, %c2176] : memref<8x3200xf32, #tpu.memory_space<vmem>>, vector<8x1024xf32>
    tpu.vector_store %arg4[%c0_8, %c2176], %6 {strides = array<i32>} : memref<8x3200xf32, #tpu.memory_space<vmem>>, vector<8x1024xf32>,
    return
  }
  func.func @transform_0(%arg0: i32) -> (i32, i32) {
    %c0_i32 = arith.constant 0 : i32
    %c0_i32_0 = arith.constant 0 : i32
    %c0_i32_1 = arith.constant 0 : i32
    return %c0_i32, %c0_i32_0 : i32, i32
  }
  func.func @transform_1(%arg0: i32) -> (i32, i32) {
    %c0_i32 = arith.constant 0 : i32
    %c0_i32_0 = arith.constant 0 : i32
    return %arg0, %c0_i32 : i32, i32
  }
  func.func @transform_2(%arg0: i32) -> (i32, i32) {
    %c0_i32 = arith.constant 0 : i32
    %c0_i32_0 = arith.constant 0 : i32
    return %arg0, %c0_i32 : i32, i32
  }
  func.func @transform_3(%arg0: i32) -> (i32, i32) {
    %c0_i32 = arith.constant 0 : i32
    %c0_i32_0 = arith.constant 0 : i32
    return %arg0, %c0_i32 : i32, i32
  }
}

</mosaic_0001>

<llo_original>
// kernel: tpu_custom_call.1
$region0: #{tpu_custom_call.1}
  #allocation0 [shape = 'u32[]', space=smem, size = 0x4, offset = 0x4, fixed_abs, tag = 'smem constant byte address 0x4 - core index']
  #allocation1 [shape = 'u32[144,128]{1,0:T(1,128)}', space=vmem, size = 0x12000, scoped, tag = 'internal scratch']
  %s0 = inlined_call_operand.hbm [shape: f32[1,2048], index: 0, kind: input, shape index: {}]
  %s1 = inlined_call_operand.hbm [shape: f32[8,128], index: 1, kind: input, shape index: {}]
  %s2 = inlined_call_operand.hbm [shape: f32[8,1024], index: 2, kind: input, shape index: {}]
  %s3 = inlined_call_operand.hbm [shape: f32[8,3200], index: 3, kind: output, shape index: {}]
  %s4 = sld [smem:[#allocation0]]
  $region34: #{tpu_custom_call.1} parent=0
    _
  %s6 = ssub.s32 1, %s4
  %s7 = scalar_select 0, %s6, %s4
  $region1: #{tpu_custom_call.1} parent=0
    #allocation2 [shape = 'u8[8192]{0}', space=vmem, size = 0x2000, scoped, tag = 'input window, operand 0, single buffered']
    #allocation3 [shape = 's32[1]{0}', space=sflag, size = 0x4, scoped, tag = 'scoped memory for tpu_custom_call.1']
    #allocation4 [shape = 's32[1]{0}', space=sflag, size = 0x4, scoped, tag = 'scoped memory for tpu_custom_call.1']
    #allocation5 [shape = 'u8[4096]{0}', space=vmem, size = 0x1000, scoped, tag = 'input window, operand 1, single buffered']
    #allocation6 [shape = 's32[1]{0}', space=sflag, size = 0x4, scoped, tag = 'scoped memory for tpu_custom_call.1']
    #allocation7 [shape = 'u8[32768]{0}', space=vmem, size = 0x8000, scoped, tag = 'input window, operand 2, single buffered']
    #allocation8 [shape = 'u8[102400]{0}', space=vmem, size = 0x19000, scoped, tag = 'output window, operand 0, single buffered']
    %8 = vsyncpa [#allocation3], 0
    %9 = vsyncpa [#allocation6], 0
    %10 = vsyncpa [#allocation4], 0
    // Predicated region
    $region2: #{tpu_custom_call.1} parent=1 // pred_check
      _
    $region3: #{tpu_custom_call.1} parent=1 // pred_check_branch
      %12 = sbr.rel (0) target = $region5
    $region4: #{tpu_custom_call.1} parent=1 // pred_region
      %s14 = ssub.s32 256, 256
      %15 = vsyncadd [#allocation3], %s14
      %s17 = sshll.u32 [#allocation2], 4
      %s18 = int_to_ptr.vmem [resolvable:$true] %s17
      %20 = dma.hbm_to_vmem [thread:$0]  %s0, 256, %s18, [#allocation3]
    $region5: #{tpu_custom_call.1} parent=1 // pred_fallthru
      _
    // Predicated region
    $region6: #{tpu_custom_call.1} parent=1 // pred_check
      _
    $region7: #{tpu_custom_call.1} parent=1 // pred_check_branch
      %22 = sbr.rel (0) target = $region9
    $region8: #{tpu_custom_call.1} parent=1 // pred_region
      %s24 = ssub.s32 128, 128
      %25 = vsyncadd [#allocation6], %s24
      %s27 = sshll.u32 [#allocation5], 4
      %s28 = int_to_ptr.vmem [resolvable:$true] %s27
      %30 = dma.hbm_to_vmem [thread:$0]  %s1, 128, %s28, [#allocation6]
    $region9: #{tpu_custom_call.1} parent=1 // pred_fallthru
      _
    // Predicated region
    $region10: #{tpu_custom_call.1} parent=1 // pred_check
      _
    $region11: #{tpu_custom_call.1} parent=1 // pred_check_branch
      %32 = sbr.rel (0) target = $region13
    $region12: #{tpu_custom_call.1} parent=1 // pred_region
      %s34 = ssub.s32 1024, 1024
      %35 = vsyncadd [#allocation6], %s34
      %s37 = sshll.u32 [#allocation7], 4
      %s38 = int_to_ptr.vmem [resolvable:$true] %s37
      %40 = dma.hbm_to_vmem [thread:$0]  %s2, 1024, %s38, [#allocation6]
    $region13: #{tpu_custom_call.1} parent=1 // pred_fallthru
      _
    // Predicated region
    $region14: #{tpu_custom_call.1} parent=1 // pred_check
      _
    $region15: #{tpu_custom_call.1} parent=1 // pred_check_branch
      %42 = sbr.rel (0) target = $region17
    $region16: #{tpu_custom_call.1} parent=1 // pred_region
      %43 = dma.done [#allocation3], 256
    $region17: #{tpu_custom_call.1} parent=1 // pred_fallthru
      _
    // Predicated region
    $region18: #{tpu_custom_call.1} parent=1 // pred_check
      _
    $region19: #{tpu_custom_call.1} parent=1 // pred_check_branch
      %45 = sbr.rel (0) target = $region21
    $region20: #{tpu_custom_call.1} parent=1 // pred_region
      %46 = dma.done [#allocation6], 128
    $region21: #{tpu_custom_call.1} parent=1 // pred_fallthru
      _
    // Predicated region
    $region22: #{tpu_custom_call.1} parent=1 // pred_check
      _
    $region23: #{tpu_custom_call.1} parent=1 // pred_check_branch
      %48 = sbr.rel (0) target = $region25
    $region24: #{tpu_custom_call.1} parent=1 // pred_region
      %49 = dma.done [#allocation6], 1024
    $region25: #{tpu_custom_call.1} parent=1 // pred_fallthru
      _
    %v50 = vld [vmem:[#allocation2] sm:$0xff]
    %v51 = vld [vmem:[#allocation2 + $0x8] sm:$0xff]
    %v54 = vlaneseq
    %v55 = vshrl.u32 %v54, 7
    %v56 = vsub.s32 0, %v55
    %v57 = vrot.slane %v50, %v56
    %v58 = vlaneseq
    %v59 = vshrl.u32 %v58, 7
    %v60 = vsub.s32 1, %v59
    %v61 = vrot.slane %v50, %v60
    %v62 = vlaneseq
    %v63 = vshrl.u32 %v62, 7
    %v64 = vsub.s32 2, %v63
    %v65 = vrot.slane %v50, %v64
    %v66 = vlaneseq
    %v67 = vshrl.u32 %v66, 7
    %v68 = vsub.s32 3, %v67
    %v69 = vrot.slane %v50, %v68
    %v70 = vlaneseq
    %v71 = vshrl.u32 %v70, 7
    %v72 = vsub.s32 4, %v71
    %v73 = vrot.slane %v50, %v72
    %v74 = vlaneseq
    %v75 = vshrl.u32 %v74, 7
    %v76 = vsub.s32 5, %v75
    %v77 = vrot.slane %v50, %v76
    %v78 = vlaneseq
    %v79 = vshrl.u32 %v78, 7
    %v80 = vsub.s32 6, %v79
    %v81 = vrot.slane %v50, %v80
    %v82 = vlaneseq
    %v83 = vshrl.u32 %v82, 7
    %v84 = vsub.s32 7, %v83
    %v85 = vrot.slane %v50, %v84
    %v86 = vlaneseq
    %v87 = vshrl.u32 %v86, 7
    %v88 = vsub.s32 0, %v87
    %v89 = vrot.slane %v51, %v88
    %v90 = vlaneseq
    %v91 = vshrl.u32 %v90, 7
    %v92 = vsub.s32 1, %v91
    %v93 = vrot.slane %v51, %v92
    %v94 = vlaneseq
    %v95 = vshrl.u32 %v94, 7
    %v96 = vsub.s32 2, %v95
    %v97 = vrot.slane %v51, %v96
    %v98 = vlaneseq
    %v99 = vshrl.u32 %v98, 7
    %v100 = vsub.s32 3, %v99
    %v101 = vrot.slane %v51, %v100
    %v102 = vlaneseq
    %v103 = vshrl.u32 %v102, 7
    %v104 = vsub.s32 4, %v103
    %v105 = vrot.slane %v51, %v104
    %v106 = vlaneseq
    %v107 = vshrl.u32 %v106, 7
    %v108 = vsub.s32 5, %v107
    %v109 = vrot.slane %v51, %v108
    %v110 = vlaneseq
    %v111 = vshrl.u32 %v110, 7
    %v112 = vsub.s32 6, %v111
    %v113 = vrot.slane %v51, %v112
    %v114 = vlaneseq
    %v115 = vshrl.u32 %v114, 7
    %v116 = vsub.s32 7, %v115
    %v117 = vrot.slane %v51, %v116
    %v134 = vld [vmem:[#allocation5] sm:$0xff]
    %135 = vst [vmem:[#allocation8] sm:$0xff] %v134
    %136 = vst [vmem:[#allocation8 + $0x8] sm:$0xff] %v57
    %137 = vst [vmem:[#allocation8 + $0x10] sm:$0xff] %v61
    %138 = vst [vmem:[#allocation8 + $0x18] sm:$0xff] %v65
    %139 = vst [vmem:[#allocation8 + $0x20] sm:$0xff] %v69
    %140 = vst [vmem:[#allocation8 + $0x28] sm:$0xff] %v73
    %141 = vst [vmem:[#allocation8 + $0x30] sm:$0xff] %v77
    %142 = vst [vmem:[#allocation8 + $0x38] sm:$0xff] %v81
    %143 = vst [vmem:[#allocation8 + $0x40] sm:$0xff] %v85
    %144 = vst [vmem:[#allocation8 + $0x48] sm:$0xff] %v89
    %145 = vst [vmem:[#allocation8 + $0x50] sm:$0xff] %v93
    %146 = vst [vmem:[#allocation8 + $0x58] sm:$0xff] %v97
    %147 = vst [vmem:[#allocation8 + $0x60] sm:$0xff] %v101
    %148 = vst [vmem:[#allocation8 + $0x68] sm:$0xff] %v105
    %149 = vst [vmem:[#allocation8 + $0x70] sm:$0xff] %v109
    %150 = vst [vmem:[#allocation8 + $0x78] sm:$0xff] %v113
    %151 = vst [vmem:[#allocation8 + $0x80] sm:$0xff] %v117
    %v152 = vld [vmem:[#allocation7] sm:$0xff]
    %v153 = vld [vmem:[#allocation7 + $0x8] sm:$0xff]
    %v154 = vld [vmem:[#allocation7 + $0x10] sm:$0xff]
    %v155 = vld [vmem:[#allocation7 + $0x18] sm:$0xff]
    %v156 = vld [vmem:[#allocation7 + $0x20] sm:$0xff]
    %v157 = vld [vmem:[#allocation7 + $0x28] sm:$0xff]
    %v158 = vld [vmem:[#allocation7 + $0x30] sm:$0xff]
    %v159 = vld [vmem:[#allocation7 + $0x38] sm:$0xff]
    %160 = vst [vmem:[#allocation8 + $0x88] sm:$0xff] %v152
    %161 = vst [vmem:[#allocation8 + $0x90] sm:$0xff] %v153
    %162 = vst [vmem:[#allocation8 + $0x98] sm:$0xff] %v154
    %163 = vst [vmem:[#allocation8 + $0xa0] sm:$0xff] %v155
    %164 = vst [vmem:[#allocation8 + $0xa8] sm:$0xff] %v156
    %165 = vst [vmem:[#allocation8 + $0xb0] sm:$0xff] %v157
    %166 = vst [vmem:[#allocation8 + $0xb8] sm:$0xff] %v158
    %167 = vst [vmem:[#allocation8 + $0xc0] sm:$0xff] %v159
    // Predicated region
    $region26: #{tpu_custom_call.1} parent=1 // pred_check
      _
    $region27: #{tpu_custom_call.1} parent=1 // pred_check_branch
      %169 = sbr.rel (0) target = $region29
    $region28: #{tpu_custom_call.1} parent=1 // pred_region
      %s171 = ssub.s32 3200, 3200
      %172 = vsyncadd [#allocation4], %s171
      %s174 = sshll.u32 [#allocation8], 4
      %s175 = int_to_ptr.vmem [resolvable:$true] %s174
      %177 = dma.vmem_to_hbm [thread:$0]  %s175, 3200, %s3, [#allocation4]
    $region29: #{tpu_custom_call.1} parent=1 // pred_fallthru
      _
    // Predicated region
    $region30: #{tpu_custom_call.1} parent=1 // pred_check
      _
    $region31: #{tpu_custom_call.1} parent=1 // pred_check_branch
      %179 = sbr.rel (0) target = $region33
    $region32: #{tpu_custom_call.1} parent=1 // pred_region
      %180 = dma.done [#allocation4], 3200
    $region33: #{tpu_custom_call.1} parent=1 // pred_fallthru
      _
    %181 = vsyncpa [#allocation3], 1
    %182 = vsyncpa [#allocation6], 1
    %183 = vsyncpa [#allocation4], 1

</llo_original>
